<compile_context>
chip_gen: v7x
topology: tpu7x:2x2x1
jax: 0.10.0
libtpu: 0.0.40
codegen_flags: <defaults>
</compile_context>

<pallas_src>
import functools

import jax
import jax.numpy as jnp
from jax.experimental import pallas as pl
from jax.experimental.pallas import tpu as pltpu

IN_FEATS = 18
H1, H2, OUT = 200, 100, 2
H1P, H2P = 256, 128  # lane-padded hidden widths (multiples of 128)


def _round_up(n, m):
    return ((n + m - 1) // m) * m


def _mlp_kernel(x_ref, w1_ref, b1_ref, w2_ref, b2_ref, w3t_ref, b3_ref, o_ref):
    # fc1 + ReLU (dropout = identity in eval mode); bf16 MXU, f32 accumulation.
    h1 = jnp.dot(x_ref[...], w1_ref[...], preferred_element_type=jnp.float32)
    h1 = jnp.maximum(h1 + b1_ref[...], 0.0)

    # fc2 + ReLU (re-cast activations to bf16 so the MXU stays in bf16 mode).
    h2 = jnp.dot(h1.astype(jnp.bfloat16), w2_ref[...],
                 preferred_element_type=jnp.float32)
    h2 = jnp.maximum(h2 + b2_ref[...], 0.0)

    # fc3 on the VPU+XLU (not the MXU): logits_k = sum_lanes(h2 * w3[:,k]) + b3_k.
    # w3t_ref is the transposed weight (2, H2P) in f32 so each row broadcasts
    # across the 128-lane axis of h2.
    z0 = jnp.sum(h2 * w3t_ref[0:1, :], axis=1, keepdims=True) + b3_ref[0:1, 0:1]
    z1 = jnp.sum(h2 * w3t_ref[1:2, :], axis=1, keepdims=True) + b3_ref[0:1, 1:2]

    # 2-class log_softmax along dim=1 without wide cross-lane reductions:
    #   log_softmax(z)_k = z_k - logaddexp(z_0, z_1)   (numerically stable)
    lse = jnp.logaddexp(z0, z1)
    o_ref[:, 0:1] = z0 - lse
    o_ref[:, 1:2] = z1 - lse


def _pad_params(params):
    """Zero-pad hidden dims (200->256, 100->128); bf16 weights for fc1/fc2,
    f32 transposed weight for fc3 (VPU path)."""
    w1, b1, w2, b2, w3, b3 = params
    w1p = jnp.pad(w1, ((0, 0), (0, H1P - H1))).astype(jnp.bfloat16)
    b1p = jnp.pad(b1, ((0, 0), (0, H1P - H1))).astype(jnp.float32)
    w2p = jnp.pad(w2, ((0, H1P - H1), (0, H2P - H2))).astype(jnp.bfloat16)
    b2p = jnp.pad(b2, ((0, 0), (0, H2P - H2))).astype(jnp.float32)
    w3t = jnp.pad(w3, ((0, H2P - H2), (0, 0))).astype(jnp.float32).T  # (2, H2P)
    b3p = b3.astype(jnp.float32)
    return w1p, b1p, w2p, b2p, w3t, b3p


def _vmem_budget_bytes(TB):
    """Explicit scoped-VMEM budget for this tile size (lane-padded buffers)."""
    x_bytes = 2 * TB * 128 * 2        # x double buffer, lane-padded, bf16
    out_bytes = 2 * TB * 128 * 4      # out double buffer, lane-padded, f32
    h1_bytes = TB * H1P * (4 + 2)     # f32 activation + bf16 copy
    h2_bytes = TB * H2P * (4 + 2)
    weights = 2 << 20                 # weights/biases + compiler slack
    total = int(1.5 * (x_bytes + out_bytes + h1_bytes + h2_bytes + weights))
    # Keep within v7x's 64 MiB per-TC VMEM; at least the 16 MiB v5e default.
    return int(min(64 << 20, max(16 << 20, total)))


@functools.partial(jax.jit, static_argnames=("tb",))
def mlp_forward(x, params, tb=2048):
    """x: [B, 18] float32 -> [B, 2] float32 (log-probabilities)."""
    B = x.shape[0]
    tb = min(tb, 4096)                       # VMEM cap (v7x: 64 MiB/TC)
    num_tiles = max(1, -(-B // tb))          # ceil(B / tb)
    TB = _round_up(-(-B // num_tiles), 8)    # smallest 8-aligned tile that covers B
    B_pad = TB * num_tiles                   # <= B + 8*num_tiles of dead rows

    xp = x.astype(jnp.bfloat16)
    if B_pad != B:
        xp = jnp.pad(xp, ((0, B_pad - B), (0, 0)))

    w1, b1, w2, b2, w3t, b3 = _pad_params(params)

    const = lambda i: (0, 0)                 # weights/biases stay VMEM-resident
    out = pl.pallas_call(
        _mlp_kernel,
        out_shape=jax.ShapeDtypeStruct((B_pad, OUT), jnp.float32),
        grid=(num_tiles,),
        in_specs=[
            pl.BlockSpec((TB, IN_FEATS), lambda i: (i, 0)),  # x tiled over batch
            pl.BlockSpec((IN_FEATS, H1P), const),
            pl.BlockSpec((1, H1P), const),
            pl.BlockSpec((H1P, H2P), const),
            pl.BlockSpec((1, H2P), const),
            pl.BlockSpec((OUT, H2P), const),                 # w3^T (f32, VPU path)
            pl.BlockSpec((1, OUT), const),
        ],
        out_specs=pl.BlockSpec((TB, OUT), lambda i: (i, 0)),
        compiler_params=pltpu.CompilerParams(
            # Batch axis is embarrassingly parallel -> megacore sharding on v7x.
            dimension_semantics=("parallel",),
            vmem_limit_bytes=_vmem_budget_bytes(TB),
        ),
    )(xp, w1, b1, w2, b2, w3t, b3)
    return out[:B]


def mlp_reference(x, params):
    """Pure-JAX reference with the same precision choices (bf16 fc1/fc2, f32 fc3)."""
    w1, b1, w2, b2, w3, b3 = params
    xb = x.astype(jnp.bfloat16)
    h1 = jax.nn.relu(
        jnp.dot(xb, w1.astype(jnp.bfloat16),
                preferred_element_type=jnp.float32) + b1)
    h2 = jax.nn.relu(
        jnp.dot(h1.astype(jnp.bfloat16), w2.astype(jnp.bfloat16),
                preferred_element_type=jnp.float32) + b2)
    logits = jnp.dot(h2, w3.astype(jnp.float32)) + b3
    return jax.nn.log_softmax(logits, axis=1)


def init_params(key):
    """Deterministic init mimicking nn.Linear default (U(-1/sqrt(fan_in), ...))."""
    ks = jax.random.split(key, 6)

    def lin(kw, kb, fan_in, fan_out):
        bound = 1.0 / jnp.sqrt(fan_in)
        w = jax.random.uniform(kw, (fan_in, fan_out), jnp.float32, -bound, bound)
        b = jax.random.uniform(kb, (1, fan_out), jnp.float32, -bound, bound)
        return w, b

    w1, b1 = lin(ks[0], ks[1], IN_FEATS, H1)
    w2, b2 = lin(ks[2], ks[3], H1, H2)
    w3, b3 = lin(ks[4], ks[5], H2, OUT)
    return (w1, b1, w2, b2, w3, b3)


# TODO(synk): training-mode dropout (pltpu.prng_seed / prng_random_bits) and the
# unused BatchNorm1d layers are not implemented; forward() in eval mode needs neither.

if __name__ == "__main__":
    key = jax.random.PRNGKey(0)
    k_params, k_x = jax.random.split(key)

    params = init_params(k_params)
    B = 8
    x = jax.random.normal(k_x, (B, IN_FEATS), dtype=jnp.float32)

    out = mlp_forward(x, params)
    out = jax.block_until_ready(out)

    # sanity 1: log_softmax rows exp-sum to 1
    row_sums = jnp.sum(jnp.exp(out), axis=1)
    assert out.shape == (B, OUT)
    assert bool(jnp.all(jnp.abs(row_sums - 1.0) < 1e-3))

    # sanity 2: matches a pure-JAX reference with identical precision choices
    ref = jax.block_until_ready(mlp_reference(x, params))
    assert bool(jnp.all(jnp.abs(out - ref) < 1e-2))

    print("KERNEL_OK")
</pallas_src>

<mosaic_0001>
module attributes {stable_mosaic.version = 11 : i64} {
  func.func @_mlp_kernel(%arg0: i32, %arg1: memref<8x18xbf16, #tpu.memory_space<vmem>>, %arg2: memref<18x256xbf16, #tpu.memory_space<vmem>>, %arg3: memref<1x256xf32, #tpu.memory_space<vmem>>, %arg4: memref<256x128xbf16, #tpu.memory_space<vmem>>, %arg5: memref<1x128xf32, #tpu.memory_space<vmem>>, %arg6: memref<2x128xf32, #tpu.memory_space<vmem>>, %arg7: memref<1x2xf32, #tpu.memory_space<vmem>>, %arg8: memref<8x2xf32, #tpu.memory_space<vmem>>) attributes {dimension_semantics = [#tpu.dimension_semantics<parallel>], iteration_bounds = array<i64: 1>, scalar_prefetch = 0 : i64, scratch_operands = 0 : i64, tpu.core_type = #tpu.core_type<tc>, window_params = [{transform_indices = @transform_0, window_bounds = array<i64: 8, 18>}, {pipeline_mode = #tpu.pipeline_mode<synchronous>, transform_indices = @transform_1, window_bounds = array<i64: 18, 256>}, {pipeline_mode = #tpu.pipeline_mode<synchronous>, transform_indices = @transform_2, window_bounds = array<i64: 1, 256>}, {pipeline_mode = #tpu.pipeline_mode<synchronous>, transform_indices = @transform_3, window_bounds = array<i64: 256, 128>}, {pipeline_mode = #tpu.pipeline_mode<synchronous>, transform_indices = @transform_4, window_bounds = array<i64: 1, 128>}, {pipeline_mode = #tpu.pipeline_mode<synchronous>, transform_indices = @transform_5, window_bounds = array<i64: 2, 128>}, {pipeline_mode = #tpu.pipeline_mode<synchronous>, transform_indices = @transform_6, window_bounds = array<i64: 1, 2>}, {transform_indices = @transform_7, window_bounds = array<i64: 8, 2>}]} {
    %c0 = arith.constant 0 : index
    %c0_0 = arith.constant 0 : index
    %0 = vector.load %arg1[%c0, %c0_0] : memref<8x18xbf16, #tpu.memory_space<vmem>>, vector<8x18xbf16>
    %c0_1 = arith.constant 0 : index
    %c0_2 = arith.constant 0 : index
    %1 = vector.load %arg2[%c0_1, %c0_2] : memref<18x256xbf16, #tpu.memory_space<vmem>>, vector<18x256xbf16>
    %cst = arith.constant dense<0.000000e+00> : vector<8x256xf32>
    %2 = tpu.matmul %0, %1, %cst {dimension_numbers = #tpu.dot_dimension_numbers<[1], [0], [0], [1], [0, 0, 1, 1], [], []>} : vector<8x18xbf16>, vector<18x256xbf16>, vector<8x256xf32> -> vector<8x256xf32>
    %c0_3 = arith.constant 0 : index
    %c0_4 = arith.constant 0 : index
    %3 = vector.load %arg3[%c0_3, %c0_4] : memref<1x256xf32, #tpu.memory_space<vmem>>, vector<1x256xf32>
    %4 = vector.broadcast %3 : vector<1x256xf32> to vector<8x256xf32>
    %5 = arith.addf %2, %4 : vector<8x256xf32>
    %cst_5 = arith.constant 0.000000e+00 : f32
    %6 = vector.broadcast %cst_5 : f32 to vector<8x256xf32>
    %7 = arith.maximumf %5, %6 : vector<8x256xf32>
    %8 = arith.truncf %7 : vector<8x256xf32> to vector<8x256xbf16>
    %c0_6 = arith.constant 0 : index
    %c0_7 = arith.constant 0 : index
    %9 = vector.load %arg4[%c0_6, %c0_7] : memref<256x128xbf16, #tpu.memory_space<vmem>>, vector<256x128xbf16>
    %cst_8 = arith.constant dense<0.000000e+00> : vector<8x128xf32>
    %10 = tpu.matmul %8, %9, %cst_8 {dimension_numbers = #tpu.dot_dimension_numbers<[1], [0], [0], [1], [0, 0, 1, 1], [], []>} : vector<8x256xbf16>, vector<256x128xbf16>, vector<8x128xf32> -> vector<8x128xf32>
    %c0_9 = arith.constant 0 : index
    %c0_10 = arith.constant 0 : index
    %11 = vector.load %arg5[%c0_9, %c0_10] : memref<1x128xf32, #tpu.memory_space<vmem>>, vector<1x128xf32>
    %12 = vector.broadcast %11 : vector<1x128xf32> to vector<8x128xf32>
    %13 = arith.addf %10, %12 : vector<8x128xf32>
    %cst_11 = arith.constant 0.000000e+00 : f32
    %14 = vector.broadcast %cst_11 : f32 to vector<8x128xf32>
    %15 = arith.maximumf %13, %14 : vector<8x128xf32>
    %c0_12 = arith.constant 0 : index
    %c0_13 = arith.constant 0 : index
    %16 = vector.load %arg6[%c0_12, %c0_13] : memref<2x128xf32, #tpu.memory_space<vmem>>, vector<1x128xf32>
    %17 = vector.broadcast %16 : vector<1x128xf32> to vector<8x128xf32>
    %18 = arith.mulf %15, %17 : vector<8x128xf32>
    %cst_14 = arith.constant dense<0.000000e+00> : vector<8xf32>
    %19 = vector.multi_reduction <add>, %18, %cst_14 [1] : vector<8x128xf32> to vector<8xf32>
    %20 = vector.shape_cast %19 : vector<8xf32> to vector<8x1xf32>
    %c0_15 = arith.constant 0 : index
    %c0_16 = arith.constant 0 : index
    %21 = vector.load %arg7[%c0_15, %c0_16] : memref<1x2xf32, #tpu.memory_space<vmem>>, vector<1x1xf32>
    %22 = vector.broadcast %21 : vector<1x1xf32> to vector<8x1xf32>
    %23 = arith.addf %20, %22 : vector<8x1xf32>
    %c1 = arith.constant 1 : index
    %c0_17 = arith.constant 0 : index
    %24 = vector.load %arg6[%c1, %c0_17] : memref<2x128xf32, #tpu.memory_space<vmem>>, vector<1x128xf32>
    %25 = vector.broadcast %24 : vector<1x128xf32> to vector<8x128xf32>
    %26 = arith.mulf %15, %25 : vector<8x128xf32>
    %cst_18 = arith.constant dense<0.000000e+00> : vector<8xf32>
    %27 = vector.multi_reduction <add>, %26, %cst_18 [1] : vector<8x128xf32> to vector<8xf32>
    %28 = vector.shape_cast %27 : vector<8xf32> to vector<8x1xf32>
    %c0_19 = arith.constant 0 : index
    %c1_20 = arith.constant 1 : index
    %29 = vector.load %arg7[%c0_19, %c1_20] : memref<1x2xf32, #tpu.memory_space<vmem>>, vector<1x1xf32>
    %30 = vector.broadcast %29 : vector<1x1xf32> to vector<8x1xf32>
    %31 = arith.addf %28, %30 : vector<8x1xf32>
    %32 = arith.maximumf %23, %31 : vector<8x1xf32>
    %33 = arith.subf %23, %31 : vector<8x1xf32>
    %34 = arith.cmpf one, %33, %33 : vector<8x1xf32>
    %35 = arith.addf %23, %31 : vector<8x1xf32>
    %36 = math.absf %33 : vector<8x1xf32>
    %cst_21 = arith.constant 0.000000e+00 : f32
    %37 = vector.broadcast %cst_21 : f32 to vector<8x1xf32>
    %38 = arith.subf %37, %36 : vector<8x1xf32>
    %39 = math.exp %38 : vector<8x1xf32>
    %40 = math.log1p %39 : vector<8x1xf32>
    %41 = arith.addf %32, %40 : vector<8x1xf32>
    %42 = arith.select %34, %35, %41 : vector<8x1xi1>, vector<8x1xf32>
    %43 = arith.subf %23, %42 : vector<8x1xf32>
    %c0_22 = arith.constant 0 : index
    %c0_23 = arith.constant 0 : index
    %44 = vector.load %arg8[%c0_22, %c0_23] : memref<8x2xf32, #tpu.memory_space<vmem>>, vector<8x1xf32>
    tpu.vector_store %arg8[%c0_22, %c0_23], %43 {strides = array<i32>} : memref<8x2xf32, #tpu.memory_space<vmem>>, vector<8x1xf32>,
    %45 = arith.subf %31, %42 : vector<8x1xf32>
    %c0_24 = arith.constant 0 : index
    %c1_25 = arith.constant 1 : index
    %46 = vector.load %arg8[%c0_24, %c1_25] : memref<8x2xf32, #tpu.memory_space<vmem>>, vector<8x1xf32>
    tpu.vector_store %arg8[%c0_24, %c1_25], %45 {strides = array<i32>} : memref<8x2xf32, #tpu.memory_space<vmem>>, vector<8x1xf32>,
    return
  }
  func.func @transform_0(%arg0: i32) -> (i32, i32) {
    %c0_i32 = arith.constant 0 : i32
    %c0_i32_0 = arith.constant 0 : i32
    return %arg0, %c0_i32 : i32, i32
  }
  func.func @transform_1(%arg0: i32) -> (i32, i32) {
    %c0_i32 = arith.constant 0 : i32
    %c0_i32_0 = arith.constant 0 : i32
    %c0_i32_1 = arith.constant 0 : i32
    return %c0_i32, %c0_i32_0 : i32, i32
  }
  func.func @transform_2(%arg0: i32) -> (i32, i32) {
    %c0_i32 = arith.constant 0 : i32
    %c0_i32_0 = arith.constant 0 : i32
    %c0_i32_1 = arith.constant 0 : i32
    return %c0_i32, %c0_i32_0 : i32, i32
  }
  func.func @transform_3(%arg0: i32) -> (i32, i32) {
    %c0_i32 = arith.constant 0 : i32
    %c0_i32_0 = arith.constant 0 : i32
    %c0_i32_1 = arith.constant 0 : i32
    return %c0_i32, %c0_i32_0 : i32, i32
  }
  func.func @transform_4(%arg0: i32) -> (i32, i32) {
    %c0_i32 = arith.constant 0 : i32
    %c0_i32_0 = arith.constant 0 : i32
    %c0_i32_1 = arith.constant 0 : i32
    return %c0_i32, %c0_i32_0 : i32, i32
  }
  func.func @transform_5(%arg0: i32) -> (i32, i32) {
    %c0_i32 = arith.constant 0 : i32
    %c0_i32_0 = arith.constant 0 : i32
    %c0_i32_1 = arith.constant 0 : i32
    return %c0_i32, %c0_i32_0 : i32, i32
  }
  func.func @transform_6(%arg0: i32) -> (i32, i32) {
    %c0_i32 = arith.constant 0 : i32
    %c0_i32_0 = arith.constant 0 : i32
    %c0_i32_1 = arith.constant 0 : i32
    return %c0_i32, %c0_i32_0 : i32, i32
  }
  func.func @transform_7(%arg0: i32) -> (i32, i32) {
    %c0_i32 = arith.constant 0 : i32
    %c0_i32_0 = arith.constant 0 : i32
    return %arg0, %c0_i32 : i32, i32
  }
}

</mosaic_0001>

<llo_original>
// kernel: mlp_forward.1
$region0: #{mlp_forward.1}
  #allocation0 [shape = 'u32[]', space=smem, size = 0x4, offset = 0x4, fixed_abs, tag = 'smem constant byte address 0x4 - core index']
  #allocation1 [shape = 'u32[144,128]{1,0:T(1,128)}', space=vmem, size = 0x12000, scoped, tag = 'internal scratch']
  %s0 = inlined_call_operand.vmem [shape: bf16[8,18], index: 0, kind: input, shape index: {}]
  %s1 = inlined_call_operand.vmem [shape: bf16[18,256], index: 1, kind: input, shape index: {}]
  %s2 = inlined_call_operand.vmem [shape: f32[1,256], index: 2, kind: input, shape index: {}]
  %s3 = inlined_call_operand.vmem [shape: bf16[256,128], index: 3, kind: input, shape index: {}]
  %s4 = inlined_call_operand.vmem [shape: f32[1,128], index: 4, kind: input, shape index: {}]
  %s5 = inlined_call_operand.vmem [shape: f32[2,128], index: 5, kind: input, shape index: {}]
  %s6 = inlined_call_operand.vmem [shape: f32[1,2], index: 6, kind: input, shape index: {}]
  %s7 = inlined_call_operand.vmem [shape: f32[8,2], index: 7, kind: output, shape index: {}]
  %s8 = sld [smem:[#allocation0]]
  $region38: #{mlp_forward.1} parent=0
    _
  %s10 = ssub.s32 1, %s8
  %s11 = scalar_select 0, %s10, %s8
  // Predicated region
  $region2: #{mlp_forward.1} parent=0 // pred_check
    _
  $region3: #{mlp_forward.1} parent=0 // pred_check_branch
    %13 = sbr.rel (0) target = $region5
  $region4: #{mlp_forward.1} parent=0 // pred_region
    _
  $region5: #{mlp_forward.1} parent=0 // pred_fallthru
    _
  // Predicated region
  $region6: #{mlp_forward.1} parent=0 // pred_check
    _
  $region7: #{mlp_forward.1} parent=0 // pred_check_branch
    %15 = sbr.rel (0) target = $region9
  $region8: #{mlp_forward.1} parent=0 // pred_region
    _
  $region9: #{mlp_forward.1} parent=0 // pred_fallthru
    _
  // Predicated region
  $region10: #{mlp_forward.1} parent=0 // pred_check
    _
  $region11: #{mlp_forward.1} parent=0 // pred_check_branch
    %17 = sbr.rel (0) target = $region13
  $region12: #{mlp_forward.1} parent=0 // pred_region
    _
  $region13: #{mlp_forward.1} parent=0 // pred_fallthru
    _
  // Predicated region
  $region14: #{mlp_forward.1} parent=0 // pred_check
    _
  $region15: #{mlp_forward.1} parent=0 // pred_check_branch
    %19 = sbr.rel (0) target = $region17
  $region16: #{mlp_forward.1} parent=0 // pred_region
    _
  $region17: #{mlp_forward.1} parent=0 // pred_fallthru
    _
  // Predicated region
  $region18: #{mlp_forward.1} parent=0 // pred_check
    _
  $region19: #{mlp_forward.1} parent=0 // pred_check_branch
    %21 = sbr.rel (0) target = $region21
  $region20: #{mlp_forward.1} parent=0 // pred_region
    _
  $region21: #{mlp_forward.1} parent=0 // pred_fallthru
    _
  // Predicated region
  $region22: #{mlp_forward.1} parent=0 // pred_check
    _
  $region23: #{mlp_forward.1} parent=0 // pred_check_branch
    %23 = sbr.rel (0) target = $region25
  $region24: #{mlp_forward.1} parent=0 // pred_region
    _
  $region25: #{mlp_forward.1} parent=0 // pred_fallthru
    _
  // Predicated region
  $region26: #{mlp_forward.1} parent=0 // pred_check
    _
  $region27: #{mlp_forward.1} parent=0 // pred_check_branch
    %25 = sbr.rel (0) target = $region29
  $region28: #{mlp_forward.1} parent=0 // pred_region
    _
  $region29: #{mlp_forward.1} parent=0 // pred_fallthru
    _
  %v27 = vld [vmem:[%s0] sm:$0xf]
  %v28 = vld [vmem:[%s1] sm:$0xff]
  %v29 = vld [vmem:[%s1 + $0x8] sm:$0xff]
  %v30 = vld [vmem:[%s1 + $0x10] sm:$0x11]
  %v31 = vld [vmem:[%s2] sm:$0x3]
  %v33 = vlaneseq
  %v34 = vshrl.u32 %v33, 7
  %v35 = vsub.s32 0, %v34
  %v36 = vrot.slane %v31, %v35
  %v37 = vlaneseq
  %v38 = vshrl.u32 %v37, 7
  %v39 = vsub.s32 1, %v38
  %v40 = vrot.slane %v31, %v39
  %v46 = vunpack.c.l.b16 %v28
  %v47 = vunpack.c.h.b16 %v28
  %v48 = vunpack.c.l.b16 %v29
  %v49 = vunpack.c.h.b16 %v29
  %v50 = vunpack.c.l.b16 %v30
  %v51 = vunpack.c.h.b16 %v30
  %v52 = vpack.c.b16 %v48, %v46
  %v53 = vpack.c.b16 %v49, %v47
  %v54 = vpack.c.b16 %v50, %v50
  %v55 = vpack.c.b16 %v51, %v51
  %vm58 = vcmask 146432
  %v60 = vsel %vm58, %v27, 0
  %vm62 = vcmask 1040384
  %v64 = vsel %vm62, %v54, 0
  %v67 = vsel %vm62, %v55, 0
  %69 = vmatprep.subr.bf16.mxu0 %v53
  %70 = vmatpush1.bf16.msra.mxu0 %v52
  %71 = vmatprep.subr.bf16.mxu0 %v67
  %72 = vmatpush1.bf16.msra.mxu0 %v64
  %73 = vmatprep.subr.bf16.mxu0 0
  %74 = vmatpush1.bf16.msra.mxu0 0
  %75 = vmatprep.subr.bf16.mxu0 0
  %76 = vmatpush1.bf16.msra.mxu0 0
  %77 = vmatprep.subr.bf16.mxu0 0
  %78 = vmatpush1.bf16.msra.mxu0 0
  %79 = vmatprep.subr.bf16.mxu0 0
  %80 = vmatpush1.bf16.msra.mxu0 0
  %81 = vmatprep.subr.bf16.mxu0 0
  %82 = vmatpush1.bf16.msra.mxu0 0
  %83 = vmatprep.subr.bf16.mxu0 0
  %84 = vmatpush1.bf16.msra.mxu0 0
  %85 = vmatprep.subr.bf16.mxu0 0
  %86 = vmatpush1.bf16.msra.mxu0 0
  %87 = vmatprep.subr.bf16.mxu0 0
  %88 = vmatpush1.bf16.msra.mxu0 0
  %89 = vmatprep.subr.bf16.mxu0 0
  %90 = vmatpush1.bf16.msra.mxu0 0
  %91 = vmatprep.subr.bf16.mxu0 0
  %92 = vmatpush1.bf16.msra.mxu0 0
  %93 = vmatprep.subr.bf16.mxu0 0
  %94 = vmatpush1.bf16.msra.mxu0 0
  %95 = vmatprep.subr.bf16.mxu0 0
  %96 = vmatpush1.bf16.msra.mxu0 0
  %97 = vmatprep.subr.bf16.mxu0 0
  %98 = vmatpush1.bf16.msra.mxu0 0
  %99 = vmatprep.subr.bf16.mxu0 0
  %100 = vmatpush1.bf16.msra.mxu0 0
  %101 = vmatprep.mubr.bf16.mxu0 0
  %102 = vmatmul.mubr.bf16.gmra.mrb[0].mxu0 %v60
  %v103 = vpop.f32.mrb[0].mxu0
  %v104 = vadd.f32 %v36, %v103
  %v105 = vpop.f32.mrb[0].mxu0
  %v106 = vadd.f32 %v40, %v105
  %v107 = vpop.f32.mrb[0].mxu0
  %v108 = vpop.f32.mrb[0].mxu0
  %109 = vdwg.mxu0
  %v110 = vmax.f32 %v104, 0.0
  %v111 = vmax.f32 %v106, 0.0
  %v112 = vpack.c.bf16 %v110, %v110
  %v113 = vpack.c.bf16 %v111, %v111
  %v114 = vld [vmem:[%s3] sm:$0xf]
  %v115 = vld [vmem:[%s3 + $0x4] sm:$0xf]
  %v116 = vld [vmem:[%s3 + $0x8] sm:$0xf]
  %v117 = vld [vmem:[%s3 + $0xc] sm:$0xf]
  %v118 = vld [vmem:[%s3 + $0x10] sm:$0xf]
  %v119 = vld [vmem:[%s3 + $0x14] sm:$0xf]
  %v120 = vld [vmem:[%s3 + $0x18] sm:$0xf]
  %v121 = vld [vmem:[%s3 + $0x1c] sm:$0xf]
  %v122 = vld [vmem:[%s3 + $0x20] sm:$0xf]
  %v123 = vld [vmem:[%s3 + $0x24] sm:$0xf]
  %v124 = vld [vmem:[%s3 + $0x28] sm:$0xf]
  %v125 = vld [vmem:[%s3 + $0x2c] sm:$0xf]
  %v126 = vld [vmem:[%s3 + $0x30] sm:$0xf]
  %v127 = vld [vmem:[%s3 + $0x34] sm:$0xf]
  %v128 = vld [vmem:[%s3 + $0x38] sm:$0xf]
  %v129 = vld [vmem:[%s3 + $0x3c] sm:$0xf]
  %v130 = vld [vmem:[%s3 + $0x40] sm:$0xf]
  %v131 = vld [vmem:[%s3 + $0x44] sm:$0xf]
  %v132 = vld [vmem:[%s3 + $0x48] sm:$0xf]
  %v133 = vld [vmem:[%s3 + $0x4c] sm:$0xf]
  %v134 = vld [vmem:[%s3 + $0x50] sm:$0xf]
  %v135 = vld [vmem:[%s3 + $0x54] sm:$0xf]
  %v136 = vld [vmem:[%s3 + $0x58] sm:$0xf]
  %v137 = vld [vmem:[%s3 + $0x5c] sm:$0xf]
  %v138 = vld [vmem:[%s3 + $0x60] sm:$0xf]
  %v139 = vld [vmem:[%s3 + $0x64] sm:$0xf]
  %v140 = vld [vmem:[%s3 + $0x68] sm:$0xf]
  %v141 = vld [vmem:[%s3 + $0x6c] sm:$0xf]
  %v142 = vld [vmem:[%s3 + $0x70] sm:$0xf]
  %v143 = vld [vmem:[%s3 + $0x74] sm:$0xf]
  %v144 = vld [vmem:[%s3 + $0x78] sm:$0xf]
  %v145 = vld [vmem:[%s3 + $0x7c] sm:$0xf]
  %v146 = vld [vmem:[%s4] sm:$0x1]
  %v148 = vlaneseq
  %v149 = vshrl.u32 %v148, 7
  %v150 = vsub.s32 0, %v149
  %v151 = vrot.slane %v146, %v150
  %v185 = vunpack.c.l.b16 %v114
  %v186 = vunpack.c.l.b16 %v115
  %v187 = vunpack.c.l.b16 %v116
  %v188 = vunpack.c.l.b16 %v117
  %v189 = vunpack.c.l.b16 %v118
  %v190 = vunpack.c.l.b16 %v119
  %v191 = vunpack.c.l.b16 %v120
  %v192 = vunpack.c.l.b16 %v121
  %v193 = vunpack.c.l.b16 %v122
  %v194 = vunpack.c.l.b16 %v123
  %v195 = vunpack.c.l.b16 %v124
  %v196 = vunpack.c.l.b16 %v125
  %v197 = vunpack.c.l.b16 %v126
  %v198 = vunpack.c.l.b16 %v127
  %v199 = vunpack.c.l.b16 %v128
  %v200 = vunpack.c.l.b16 %v129
  %v201 = vunpack.c.l.b16 %v130
  %v202 = vunpack.c.l.b16 %v131
  %v203 = vunpack.c.l.b16 %v132
  %v204 = vunpack.c.l.b16 %v133
  %v205 = vunpack.c.l.b16 %v134
  %v206 = vunpack.c.l.b16 %v135
  %v207 = vunpack.c.l.b16 %v136
  %v208 = vunpack.c.l.b16 %v137
  %v209 = vunpack.c.l.b16 %v138
  %v210 = vunpack.c.l.b16 %v139
  %v211 = vunpack.c.l.b16 %v140
  %v212 = vunpack.c.l.b16 %v141
  %v213 = vunpack.c.l.b16 %v142
  %v214 = vunpack.c.l.b16 %v143
  %v215 = vunpack.c.l.b16 %v144
  %v216 = vunpack.c.l.b16 %v145
  %v217 = vpack.c.b16 %v186, %v185
  %v218 = vpack.c.b16 %v188, %v187
  %v219 = vpack.c.b16 %v190, %v189
  %v220 = vpack.c.b16 %v192, %v191
  %v221 = vpack.c.b16 %v194, %v193
  %v222 = vpack.c.b16 %v196, %v195
  %v223 = vpack.c.b16 %v198, %v197
  %v224 = vpack.c.b16 %v200, %v199
  %v225 = vpack.c.b16 %v202, %v201
  %v226 = vpack.c.b16 %v204, %v203
  %v227 = vpack.c.b16 %v206, %v205
  %v228 = vpack.c.b16 %v208, %v207
  %v229 = vpack.c.b16 %v210, %v209
  %v230 = vpack.c.b16 %v212, %v211
  %v231 = vpack.c.b16 %v214, %v213
  %v232 = vpack.c.b16 %v216, %v215
  %249 = vmatprep.subr.bf16.mxu0 0
  %250 = vmatpush1.bf16.msra.mxu0 %v217
  %251 = vmatprep.subr.bf16.mxu0 0
  %252 = vmatpush1.bf16.msra.mxu0 %v218
  %253 = vmatprep.subr.bf16.mxu0 0
  %254 = vmatpush1.bf16.msra.mxu0 %v219
  %255 = vmatprep.subr.bf16.mxu0 0
  %256 = vmatpush1.bf16.msra.mxu0 %v220
  %257 = vmatprep.subr.bf16.mxu0 0
  %258 = vmatpush1.bf16.msra.mxu0 %v221
  %259 = vmatprep.subr.bf16.mxu0 0
  %260 = vmatpush1.bf16.msra.mxu0 %v222
  %261 = vmatprep.subr.bf16.mxu0 0
  %262 = vmatpush1.bf16.msra.mxu0 %v223
  %263 = vmatprep.subr.bf16.mxu0 0
  %264 = vmatpush1.bf16.msra.mxu0 %v224
  %265 = vmatprep.subr.bf16.mxu0 0
  %266 = vmatpush1.bf16.msra.mxu0 %v225
  %267 = vmatprep.subr.bf16.mxu0 0
  %268 = vmatpush1.bf16.msra.mxu0 %v226
  %269 = vmatprep.subr.bf16.mxu0 0
  %270 = vmatpush1.bf16.msra.mxu0 %v227
  %271 = vmatprep.subr.bf16.mxu0 0
  %272 = vmatpush1.bf16.msra.mxu0 %v228
  %273 = vmatprep.subr.bf16.mxu0 0
  %274 = vmatpush1.bf16.msra.mxu0 %v229
  %275 = vmatprep.subr.bf16.mxu0 0
  %276 = vmatpush1.bf16.msra.mxu0 %v230
  %277 = vmatprep.subr.bf16.mxu0 0
  %278 = vmatpush1.bf16.msra.mxu0 %v231
  %279 = vmatprep.subr.bf16.mxu0 0
  %280 = vmatpush1.bf16.msra.mxu0 %v232
  %281 = vmatprep.mubr.bf16.mxu0 %v113
  %282 = vmatmul.mubr.bf16.gmra.mrb[0].mxu0 %v112
  %v283 = vpop.f32.mrb[0].mxu0
  %v284 = vadd.f32 %v151, %v283
  %v285 = vpop.f32.mrb[0].mxu0
  %v286 = vpop.f32.mrb[0].mxu0
  %v287 = vpop.f32.mrb[0].mxu0
  %288 = vdwg.mxu0
  %v289 = vmax.f32 %v284, 0.0
  %v290 = vld [vmem:[%s5] sm:$0x1]
  %v291 = vlaneseq
  %v292 = vshrl.u32 %v291, 7
  %v293 = vsub.s32 0, %v292
  %v294 = vrot.slane %v290, %v293
  %v295 = vmul.f32 %v289, %v294
  %296 = vadd.xlane.f32.xlu0 %v295
  %v297 = vpop.xlane.xlu0 %296
  %v298 = vld [vmem:[%s6] sm:$0x1]
  %v300 = vlaneseq
  %v301 = vshrl.u32 %v300, 7
  %v302 = vsub.s32 0, %v301
  %v303 = vrot.slane %v298, %v302
  %v305 = vadd.f32 %v297, %v303
  %v306 = vld [vmem:[%s5 + $0x1] sm:$0x1]
  %v307 = vlaneseq
  %v308 = vshrl.u32 %v307, 7
  %v309 = vsub.s32 0, %v308
  %v310 = vrot.slane %v306, %v309
  %v311 = vmul.f32 %v289, %v310
  %312 = vadd.xlane.f32.xlu0 %v311
  %v313 = vpop.xlane.xlu0 %312
  %v314 = vadd.f32 %v313, %v303
  %316 = vrot.lane.b32.xlu0 %v314, 127
  %v317 = vpop.permute.xlu0 %316
  %v319 = vmax.f32 %v305, %v317
  %v320 = vsub.f32 %v305, %v317
  %vm321 = vcmp.ne.f32.partialorder %v320, %v320
  %v322 = vadd.f32 %v305, %v317
  %v323 = vand.u32 2147483647, %v320
  %v324 = vsub.f32 0.0, %v323
  %v325 = vmul.f32 %v324, 1.442695
  %v326 = vpow.pop %v325
  %v327 = vadd.f32 %v326, 1.0
  %v328 = vlog2.pop %v327
  %v329 = vmul.f32 %v328, 0.6931472
  %v330 = vmul.f32 -0.5, %v326
  %v331 = vadd.f32 %v330, 1.0
  %v332 = vmul.f32 %v331, %v326
  %v333 = vand.u32 2147483647, %v326
  %vm334 = vcmp.lt.f32.partialorder %v333, 0.0004427343
  %v335 = vsel %vm334, %v332, %v329
  %v336 = vadd.f32 %v319, %v335
  %v337 = vsel %vm321, %v322, %v336
  %v338 = vsub.f32 %v305, %v337
  %vm339 = vcmask 7168
  %340 = vst.msk [vmem:[%s7] sm:$0xff] %vm339, %v338
  %342 = vrot.lane.b32.xlu0 %v337, 1
  %v343 = vpop.permute.xlu0 %342
  %v345 = vsub.f32 %v314, %v343
  %vm346 = vcmask 15368
  %347 = vst.msk [vmem:[%s7] sm:$0xff] %vm346, %v345
  // Predicated region
  $region30: #{mlp_forward.1} parent=0 // pred_check
    _
  $region31: #{mlp_forward.1} parent=0 // pred_check_branch
    %349 = sbr.rel (0) target = $region33
  $region32: #{mlp_forward.1} parent=0 // pred_region
    _
  $region33: #{mlp_forward.1} parent=0 // pred_fallthru
    _
  // Predicated region
  $region34: #{mlp_forward.1} parent=0 // pred_check
    _
  $region35: #{mlp_forward.1} parent=0 // pred_check_branch
    %351 = sbr.rel (0) target = $region37
  $region36: #{mlp_forward.1} parent=0 // pred_region
    _
  $region37: #{mlp_forward.1} parent=0 // pred_fallthru
    _

</llo_original>
